<compile_context>
chip_gen: v5e
topology: v5e:2x2
jax: 0.10.0
libtpu: 0.0.40
codegen_flags: <defaults>
</compile_context>

<pallas_src>
import math
from functools import partial

import jax
import jax.numpy as jnp
from jax.experimental import pallas as pl
from jax.experimental.pallas import tpu as pltpu

TIME_EMB_DIM = 128


# ------------------------------ Pallas kernel --------------------------------
def time_mlp_kernel(t_ref, vec_ref, w2_ref, o_ref):
    """t_ref: (Bb, 1) f32; vec_ref: (3, D) f32 rows = [w1, b1, b2];
    w2_ref: (D, D) bf16 (in, out); o_ref: (Bb, D) f32."""
    t = t_ref[...]                                     # (Bb, 1) f32
    w1 = vec_ref[0:1, :]                               # (1, D) static slices: free
    b1 = vec_ref[1:2, :]
    b2 = vec_ref[2:3, :]

    # Linear(1 -> D): broadcast outer product on the VPU (avoids a K=1 MXU matmul).
    h = t * w1 + b1                                    # (Bb, D) f32
    # SiLU in f32 (sigmoid on EUP, mul on VPU).
    h = h * jax.nn.sigmoid(h)
    # Linear(D -> D): bf16 operands on the MXU, f32 accumulation; lane-dense store.
    acc = jnp.dot(h.astype(jnp.bfloat16), w2_ref[...],
                  preferred_element_type=jnp.float32)  # (Bb, D) f32
    o_ref[...] = acc + b2


# ------------------------------ parameter prep (one-time) ---------------------
def prepare_time_mlp_params(w1, b1, w2, b2):
    """Accepts PyTorch nn.Linear layout:
         w1: (D, 1), b1: (D,), w2: (D, D) stored (out, in), b2: (D,).
       Returns (vecs (3, D) f32, w2_t (D, D) bf16 in (in, out) layout)."""
    D = b1.shape[0]
    vecs = jnp.stack(
        [jnp.asarray(w1, jnp.float32).reshape(D),
         jnp.asarray(b1, jnp.float32),
         jnp.asarray(b2, jnp.float32)],
        axis=0,
    )                                                  # (3, D) f32
    w2_t = jnp.asarray(w2, jnp.float32).T.astype(jnp.bfloat16)   # (in, out) bf16
    return vecs, w2_t


# ------------------------------ per-call wrapper -------------------------------
@partial(jax.jit, static_argnames=("block_b",))
def time_mlp(t, vecs, w2_t, *, block_b=256):
    """t: (B,); vecs: (3, D) f32; w2_t: (D, D) bf16. Returns (B, D) f32."""
    B = t.shape[0]
    D = w2_t.shape[1]
    t2 = t.astype(jnp.float32).reshape(B, 1)           # PyTorch: t.float()[:, None]

    cost = pl.CostEstimate(
        flops=2 * B * D * D + 6 * B * D,
        transcendentals=B * D,
        bytes_accessed=D * D * 2 + 3 * D * 4 + B * 4 + B * D * 4,
    )

    if B > block_b and B % block_b == 0:
        # Large batch: parallel grid over rows so both v7x TensorCores get work.
        return pl.pallas_call(
            time_mlp_kernel,
            out_shape=jax.ShapeDtypeStruct((B, D), jnp.float32),
            grid=(B // block_b,),
            in_specs=[
                pl.BlockSpec((block_b, 1), lambda i: (i, 0)),
                pl.BlockSpec((3, D), lambda i: (0, 0)),
                pl.BlockSpec((D, D), lambda i: (0, 0)),
            ],
            out_specs=pl.BlockSpec((block_b, D), lambda i: (i, 0)),
            compiler_params=pltpu.CompilerParams(dimension_semantics=("parallel",)),
            cost_estimate=cost,
        )(t2, vecs, w2_t)

    # Small batch (typical): single invocation, everything resident in VMEM, no grid.
    vmem = pl.BlockSpec(memory_space=pltpu.MemorySpace.VMEM)
    return pl.pallas_call(
        time_mlp_kernel,
        out_shape=jax.ShapeDtypeStruct((B, D), jnp.float32),
        in_specs=[vmem, vmem, vmem],
        out_specs=vmem,
        cost_estimate=cost,
    )(t2, vecs, w2_t)


# ------------------------------ reference (pure JAX, PyTorch layout) -----------
def time_mlp_ref(t, w1, b1, w2, b2):
    """w1: (D, 1), w2: (D, D) stored (out, in) — exact PyTorch nn.Linear semantics."""
    h = t.astype(jnp.float32)[:, None] @ w1.T + b1     # (B, D)
    h = h * jax.nn.sigmoid(h)
    return h @ w2.T + b2


# ------------------------------ main ------------------------------------------
if __name__ == "__main__":
    key = jax.random.PRNGKey(0)
    k1, k2, k3, k4, kt = jax.random.split(key, 5)

    D = TIME_EMB_DIM
    B = 8   # small batch; fills all 8 sublanes

    # nn.Linear default init: U(-1/sqrt(fan_in), 1/sqrt(fan_in)); weight stored (out, in).
    bnd1 = 1.0 / math.sqrt(1.0)
    w1 = jax.random.uniform(k1, (D, 1), jnp.float32, -bnd1, bnd1)
    b1 = jax.random.uniform(k2, (D,), jnp.float32, -bnd1, bnd1)
    bnd2 = 1.0 / math.sqrt(D)
    w2 = jax.random.uniform(k3, (D, D), jnp.float32, -bnd2, bnd2)
    b2 = jax.random.uniform(k4, (D,), jnp.float32, -bnd2, bnd2)

    t = jax.random.uniform(kt, (B,), jnp.float32)      # flow-matching times in [0, 1)

    # One-time parameter preparation (packing, transpose, bf16 cast) — not per call.
    vecs, w2_t = prepare_time_mlp_params(w1, b1, w2, b2)

    out = time_mlp(t, vecs, w2_t)
    out = jax.block_until_ready(out)

    expected = time_mlp_ref(t, w1, b1, w2, b2)
    assert out.shape == (B, D), out.shape
    assert bool(jnp.all(jnp.isfinite(out)))
    # bf16 MXU operands (f32 accumulation) -> relax tolerance vs. the f32 reference.
    assert bool(jnp.allclose(out, expected, atol=2e-2, rtol=2e-2))
    print("KERNEL_OK")
</pallas_src>

<mosaic_0001>
module attributes {stable_mosaic.version = 11 : i64} {
  func.func @time_mlp_kernel(%arg0: memref<8x1xf32, #tpu.memory_space<vmem>>, %arg1: memref<3x128xf32, #tpu.memory_space<vmem>>, %arg2: memref<128x128xbf16, #tpu.memory_space<vmem>>, %arg3: memref<8x128xf32, #tpu.memory_space<vmem>>) attributes {dimension_semantics = [], scalar_prefetch = 0 : i64, scratch_operands = 0 : i64, tpu.core_type = #tpu.core_type<tc>} {
    %c0 = arith.constant 0 : index
    %c0_0 = arith.constant 0 : index
    %0 = vector.load %arg0[%c0, %c0_0] : memref<8x1xf32, #tpu.memory_space<vmem>>, vector<8x1xf32>
    %c0_1 = arith.constant 0 : index
    %c0_2 = arith.constant 0 : index
    %1 = vector.load %arg1[%c0_1, %c0_2] : memref<3x128xf32, #tpu.memory_space<vmem>>, vector<1x128xf32>
    %c1 = arith.constant 1 : index
    %c0_3 = arith.constant 0 : index
    %2 = vector.load %arg1[%c1, %c0_3] : memref<3x128xf32, #tpu.memory_space<vmem>>, vector<1x128xf32>
    %c2 = arith.constant 2 : index
    %c0_4 = arith.constant 0 : index
    %3 = vector.load %arg1[%c2, %c0_4] : memref<3x128xf32, #tpu.memory_space<vmem>>, vector<1x128xf32>
    %4 = vector.broadcast %0 : vector<8x1xf32> to vector<8x128xf32>
    %5 = vector.broadcast %1 : vector<1x128xf32> to vector<8x128xf32>
    %6 = arith.mulf %4, %5 : vector<8x128xf32>
    %7 = vector.broadcast %2 : vector<1x128xf32> to vector<8x128xf32>
    %8 = arith.addf %6, %7 : vector<8x128xf32>
    %9 = arith.negf %8 : vector<8x128xf32>
    %10 = math.exp %9 : vector<8x128xf32>
    %cst = arith.constant 1.000000e+00 : f32
    %11 = vector.broadcast %cst : f32 to vector<8x128xf32>
    %12 = arith.addf %11, %10 : vector<8x128xf32>
    %13 = arith.divf %11, %12 : vector<8x128xf32>
    %14 = arith.mulf %8, %13 : vector<8x128xf32>
    %15 = arith.truncf %14 : vector<8x128xf32> to vector<8x128xbf16>
    %c0_5 = arith.constant 0 : index
    %c0_6 = arith.constant 0 : index
    %16 = vector.load %arg2[%c0_5, %c0_6] : memref<128x128xbf16, #tpu.memory_space<vmem>>, vector<128x128xbf16>
    %cst_7 = arith.constant dense<0.000000e+00> : vector<8x128xf32>
    %17 = tpu.matmul %15, %16, %cst_7 {dimension_numbers = #tpu.dot_dimension_numbers<[1], [0], [0], [1], [0, 0, 1, 1], [], []>} : vector<8x128xbf16>, vector<128x128xbf16>, vector<8x128xf32> -> vector<8x128xf32>
    %18 = vector.broadcast %3 : vector<1x128xf32> to vector<8x128xf32>
    %19 = arith.addf %17, %18 : vector<8x128xf32>
    %c0_8 = arith.constant 0 : index
    %c0_9 = arith.constant 0 : index
    %20 = vector.load %arg3[%c0_8, %c0_9] : memref<8x128xf32, #tpu.memory_space<vmem>>, vector<8x128xf32>
    tpu.vector_store %arg3[%c0_8, %c0_9], %19 {strides = array<i32>} : memref<8x128xf32, #tpu.memory_space<vmem>>, vector<8x128xf32>,
    return
  }
}

</mosaic_0001>

<llo_original>
// kernel: time_mlp.1
$region0: #{time_mlp.1}
  #allocation0 [shape = 'u32[]', space=smem, size = 0x4, offset = 0x4, fixed_abs, tag = 'smem constant byte address 0x4 - core index']
  #allocation1 [shape = 'u32[72,128]{1,0:T(1,128)}', space=vmem, size = 0x9000, scoped, tag = 'internal scratch']
  %s0 = inlined_call_operand.vmem [shape: f32[8,1], index: 0, kind: input, shape index: {}]
  %s1 = inlined_call_operand.vmem [shape: f32[3,128], index: 1, kind: input, shape index: {}]
  %s2 = inlined_call_operand.hbm [shape: bf16[128,128], index: 2, kind: input, shape index: {}]
  %s3 = inlined_call_operand.hbm [shape: f32[8,128], index: 3, kind: output, shape index: {}]
  %s4 = sld [smem:[#allocation0]]
  $region26: #{time_mlp.1} parent=0
    _
  %s6 = ssub.s32 1, %s4
  %s7 = scalar_select 0, %s6, %s4
  $region1: #{time_mlp.1} parent=0
    #allocation2 [shape = 'u8[32768]{0}', space=vmem, size = 0x8000, scoped, tag = 'input window, operand 2, single buffered']
    #allocation3 [shape = 's32[1]{0}', space=sflag, size = 0x4, scoped, tag = 'scoped memory for time_mlp.1']
    #allocation4 [shape = 's32[1]{0}', space=sflag, size = 0x4, scoped, tag = 'scoped memory for time_mlp.1']
    #allocation5 [shape = 'u8[4096]{0}', space=vmem, size = 0x1000, scoped, tag = 'output window, operand 0, single buffered']
    %8 = vsyncpa [#allocation3], 0
    %9 = vsyncpa [#allocation4], 0
    // Predicated region
    $region2: #{time_mlp.1} parent=1 // pred_check
      _
    $region3: #{time_mlp.1} parent=1 // pred_check_branch
      %11 = sbr.rel (0) target = $region5
    $region4: #{time_mlp.1} parent=1 // pred_region
      _
    $region5: #{time_mlp.1} parent=1 // pred_fallthru
      _
    // Predicated region
    $region6: #{time_mlp.1} parent=1 // pred_check
      _
    $region7: #{time_mlp.1} parent=1 // pred_check_branch
      %13 = sbr.rel (0) target = $region9
    $region8: #{time_mlp.1} parent=1 // pred_region
      _
    $region9: #{time_mlp.1} parent=1 // pred_fallthru
      _
    // Predicated region
    $region10: #{time_mlp.1} parent=1 // pred_check
      _
    $region11: #{time_mlp.1} parent=1 // pred_check_branch
      %15 = sbr.rel (0) target = $region13
    $region12: #{time_mlp.1} parent=1 // pred_region
      %17 = vsyncadd [#allocation3], 0
      %s18 = sshll.u32 %s2, 4
      %s19 = int_to_ptr.hbm [resolvable:$true] %s18
      %s20 = sshll.u32 [#allocation2], 4
      %s21 = int_to_ptr.vmem [resolvable:$true] %s20
      %26 = dma.hbm_to_vmem [thread:$0]  %s19, 1024, %s21, [#allocation3], 64, 64, 4
    $region13: #{time_mlp.1} parent=1 // pred_fallthru
      _
    // Predicated region
    $region14: #{time_mlp.1} parent=1 // pred_check
      _
    $region15: #{time_mlp.1} parent=1 // pred_check_branch
      %28 = sbr.rel (0) target = $region17
    $region16: #{time_mlp.1} parent=1 // pred_region
      %30 = dma.done [#allocation3], 1024
    $region17: #{time_mlp.1} parent=1 // pred_fallthru
      _
    %v31 = vld [vmem:[%s0] sm:$0xff]
    %v32 = vld [vmem:[%s1] sm:$0x1]
    %v33 = vld [vmem:[%s1 + $0x1] sm:$0x1]
    %v34 = vld [vmem:[%s1 + $0x2] sm:$0x1]
    %36 = vset.pattern.permute.xlu0 0
    %37 = vperm.xlu0 %36, %v31
    %v38 = vpop.permute.xlu0 %37
    %v40 = vperm.slane %v32, 0
    %v41 = vmul.f32 %v38, %v40
    %v42 = vperm.slane %v33, 0
    %v43 = vadd.f32 %v41, %v42
    %v44 = vxor.u32 %v43, 2147483648
    %v45 = vmul.f32 %v44, 1.442695
    %v46 = vpow.pop %v45
    %v47 = vadd.f32 %v46, 1.0
    %v48 = vrcp.pop %v47
    %v49 = vmul.f32 %v47, %v48
    %v50 = vsub.f32 1.0, %v49
    %v51 = vmul.f32 %v48, %v50
    %v52 = vadd.f32 %v48, %v51
    %vm53 = vweird.f32 %v47
    %vm54 = vweird.f32 %v48
    %vm55 = vmor %vm53, %vm54
    %v56 = vsel %vm55, %v48, %v52
    %v57 = vand.u32 2147483647, %v47
    %vm58 = vcmp.eq.f32.partialorder %v57, 8.507059e+37
    %v59 = vand.u32 %v47, 2147483648
    %v60 = vor.u32 1.1754944e-38, %v59
    %v61 = vsel %vm58, %v60, %v56
    %v62 = vmul.f32 1.0, %v61
    %v63 = vmul.f32 %v43, %v62
    %v64 = vpack.c.bf16 %v63, %v63
    %v65 = vld [vmem:[#allocation2] sm:$0xf]
    %v66 = vld [vmem:[#allocation2 + $0x4] sm:$0xf]
    %v67 = vld [vmem:[#allocation2 + $0x8] sm:$0xf]
    %v68 = vld [vmem:[#allocation2 + $0xc] sm:$0xf]
    %v69 = vld [vmem:[#allocation2 + $0x10] sm:$0xf]
    %v70 = vld [vmem:[#allocation2 + $0x14] sm:$0xf]
    %v71 = vld [vmem:[#allocation2 + $0x18] sm:$0xf]
    %v72 = vld [vmem:[#allocation2 + $0x1c] sm:$0xf]
    %v73 = vld [vmem:[#allocation2 + $0x20] sm:$0xf]
    %v74 = vld [vmem:[#allocation2 + $0x24] sm:$0xf]
    %v75 = vld [vmem:[#allocation2 + $0x28] sm:$0xf]
    %v76 = vld [vmem:[#allocation2 + $0x2c] sm:$0xf]
    %v77 = vld [vmem:[#allocation2 + $0x30] sm:$0xf]
    %v78 = vld [vmem:[#allocation2 + $0x34] sm:$0xf]
    %v79 = vld [vmem:[#allocation2 + $0x38] sm:$0xf]
    %v80 = vld [vmem:[#allocation2 + $0x3c] sm:$0xf]
    %v81 = vperm.slane %v34, 0
    %v98 = vunpack.c.l.b16 %v65
    %v99 = vunpack.c.l.b16 %v66
    %v100 = vunpack.c.l.b16 %v67
    %v101 = vunpack.c.l.b16 %v68
    %v102 = vunpack.c.l.b16 %v69
    %v103 = vunpack.c.l.b16 %v70
    %v104 = vunpack.c.l.b16 %v71
    %v105 = vunpack.c.l.b16 %v72
    %v106 = vunpack.c.l.b16 %v73
    %v107 = vunpack.c.l.b16 %v74
    %v108 = vunpack.c.l.b16 %v75
    %v109 = vunpack.c.l.b16 %v76
    %v110 = vunpack.c.l.b16 %v77
    %v111 = vunpack.c.l.b16 %v78
    %v112 = vunpack.c.l.b16 %v79
    %v113 = vunpack.c.l.b16 %v80
    %v114 = vpack.c.b16 %v99, %v98
    %v115 = vpack.c.b16 %v101, %v100
    %v116 = vpack.c.b16 %v103, %v102
    %v117 = vpack.c.b16 %v105, %v104
    %v118 = vpack.c.b16 %v107, %v106
    %v119 = vpack.c.b16 %v109, %v108
    %v120 = vpack.c.b16 %v111, %v110
    %v121 = vpack.c.b16 %v113, %v112
    %130 = vmatpush.bf16.msra.mxu0 %v121
    %131 = vmatpush.bf16.msra.mxu0 %v120
    %132 = vmatpush.bf16.msra.mxu0 %v119
    %133 = vmatpush.bf16.msra.mxu0 %v118
    %134 = vmatpush.bf16.msra.mxu0 %v117
    %135 = vmatpush.bf16.msra.mxu0 %v116
    %136 = vmatpush.bf16.msra.mxu0 %v115
    %137 = vmatpush.bf16.msra.mxu0 %v114
    %138 = vmatmul.bf16.gmra.mxu0 %v64
    %v139 = vpop.f32.mrf.mxu0
    %v140 = vadd.f32 %v81, %v139
    %v141 = vpop.f32.mrf.mxu0
    %142 = vdwg.mxu0
    %143 = vst [vmem:[#allocation5] sm:$0xff] %v140
    // Predicated region
    $region18: #{time_mlp.1} parent=1 // pred_check
      _
    $region19: #{time_mlp.1} parent=1 // pred_check_branch
      %145 = sbr.rel (0) target = $region21
    $region20: #{time_mlp.1} parent=1 // pred_region
      %147 = vsyncadd [#allocation4], 0
      %s149 = sshll.u32 [#allocation5], 4
      %s150 = int_to_ptr.vmem [resolvable:$true] %s149
      %s151 = sshll.u32 %s3, 4
      %s152 = int_to_ptr.hbm [resolvable:$true] %s151
      %154 = dma.vmem_to_hbm [thread:$0]  %s150, 128, %s152, [#allocation4]
    $region21: #{time_mlp.1} parent=1 // pred_fallthru
      _
    // Predicated region
    $region22: #{time_mlp.1} parent=1 // pred_check
      _
    $region23: #{time_mlp.1} parent=1 // pred_check_branch
      %156 = sbr.rel (0) target = $region25
    $region24: #{time_mlp.1} parent=1 // pred_region
      %158 = dma.done [#allocation4], 128
    $region25: #{time_mlp.1} parent=1 // pred_fallthru
      _
    %159 = vsyncpa [#allocation3], 1
    %160 = vsyncpa [#allocation4], 1

</llo_original>
